<compile_context>
chip_gen: v5e
topology: v5e:2x2
jax: 0.10.0
libtpu: 0.0.40
codegen_flags: <defaults>
</compile_context>

<pallas_src>
import math

import jax
import jax.numpy as jnp
from jax import lax
from jax.experimental import pallas as pl
from jax.experimental.pallas import tpu as pltpu

_LANES = 128
_INNER = 32  # rows per inner fori_loop slice: (32,128) f32 = 4 vregs per operand


def _cdiv(a, b):
    return (a + b - 1) // b


def _round_up(a, b):
    return _cdiv(a, b) * b


def _sublane(dtype):
    # 8 for f32, 16 for bf16, 32 for int8/fp8 (sub-32-bit dtypes pack along sublanes)
    return max(8, 32 // jnp.dtype(dtype).itemsize)


def _make_mse_kernel(*, steps, tr, rows, padded_blocks):
    """Kernel over grid (num_chunks, steps); closes over static tiling facts."""
    last_full = rows // tr          # blocks [0, last_full) are fully in-bounds
    n_inner = tr // _INNER          # static inner trip count
    unroll = min(8, n_inner)

    def _accumulate(pred_ref, true_ref, out_ref, g, masked):
        # Register-resident fold: stream (32,128) slices, square-diff, and add into
        # a (4,8,128) accumulator (4 independent VPU add chains). No VMEM spill of
        # the full (tr,128) intermediate; fully hidden under the input DMA.
        if masked:
            base_iota = lax.broadcasted_iota(jnp.int32, (_INNER, _LANES), 0)

        def body(i, acc):
            start = pl.multiple_of(i * _INNER, _INNER)
            p = pred_ref[pl.ds(start, _INNER), :]
            t = true_ref[pl.ds(start, _INNER), :]
            if p.dtype != jnp.float32:
                p = p.astype(jnp.float32)
            if t.dtype != jnp.float32:
                t = t.astype(jnp.float32)
            d = p - t
            d2 = d * d
            if masked:
                rid = base_iota + (g * tr + start)   # global row index
                d2 = jnp.where(rid < rows, d2, jnp.float32(0.0))
            return acc + d2.reshape(4, 8, _LANES)

        acc0 = jnp.zeros((4, 8, _LANES), jnp.float32)
        acc = lax.fori_loop(0, n_inner, body, acc0, unroll=unroll)
        out_ref[0] += (acc[0] + acc[1]) + (acc[2] + acc[3])

    def kernel(pred_ref, true_ref, out_ref):
        c = pl.program_id(0)
        s = pl.program_id(1)

        @pl.when(s == 0)
        def _():
            out_ref[...] = jnp.zeros_like(out_ref)

        g = c * steps + s  # logical global block id (steps is a Python int)

        if last_full == padded_blocks:
            # Exact tiling: every block fully valid, single fast path.
            _accumulate(pred_ref, true_ref, out_ref, g, masked=False)
        else:
            if last_full > 0:
                @pl.when(g < last_full)
                def _():
                    _accumulate(pred_ref, true_ref, out_ref, g, masked=False)

            @pl.when(g >= last_full)
            def _():
                # Ragged last block and fully-out-of-range duplicate blocks
                # (index_map clamps them); the row mask zeroes their contribution.
                _accumulate(pred_ref, true_ref, out_ref, g, masked=True)

    return kernel


def custom_loss_mse(y_pred, y_true, *, num_chunks=None):
    """CustomLoss(loss_func=MSE).forward(y_pred, y_true) -> scalar f32."""
    assert y_pred.shape == y_true.shape, (y_pred.shape, y_true.shape)
    total = int(math.prod(y_pred.shape))
    assert total > 0

    isz_p = int(jnp.dtype(y_pred.dtype).itemsize)
    isz_t = int(jnp.dtype(y_true.dtype).itemsize)
    sub = max(_sublane(y_pred.dtype), _sublane(y_true.dtype))
    tr_unit = 4 * sub  # keeps tr % 32 == 0 for the 4-way fold and dtype packing

    pflat = y_pred.reshape(-1)
    tflat = y_true.reshape(-1)
    # TODO(synk): when total % 128 != 0 this pads <=127 elements, which still costs a
    # full copy of both operands; a ragged-lane in-kernel mask over a 1D view would
    # avoid it. All row/tile alignment below is handled pad-free in-kernel.
    lane_pad = (-total) % _LANES
    if lane_pad:
        pflat = jnp.pad(pflat, (0, lane_pad))
        tflat = jnp.pad(tflat, (0, lane_pad))
    rows = (total + lane_pad) // _LANES
    p2 = pflat.reshape(rows, _LANES)   # zero-copy reshape when no lane_pad
    t2 = tflat.reshape(rows, _LANES)

    # Block rows: ~4 MiB per input per grid step (>=90% of HBM roofline on v7x,
    # ~86% on v6e), clamped (after rounding) so 2 inputs x 2 pipeline buffers stay
    # under a 24 MiB budget; vmem_limit_bytes is raised explicitly below.
    target_rows = (4 * 1024 * 1024) // (_LANES * max(isz_p, isz_t))
    vmem_budget = 24 * 1024 * 1024
    tr_cap = (vmem_budget // (2 * _LANES * (isz_p + isz_t)) // tr_unit) * tr_unit
    tr = min(_round_up(min(target_rows, rows), tr_unit), max(tr_unit, tr_cap))

    num_blocks = _cdiv(rows, tr)
    if num_chunks is None:
        # Split across v7x's two TensorCores whenever there are >=2 blocks;
        # harmless on single-TC v5e/v6e (one extra tiny output writeback).
        num_chunks = 2 if num_blocks >= 2 else 1
    steps = _cdiv(num_blocks, num_chunks)
    padded_blocks = num_chunks * steps

    def in_index(c, s):
        # Clamp over-indexed trailing blocks of the last chunk onto the last valid
        # block; the kernel masks their (logical) rows to zero contribution.
        return (jnp.minimum(c * steps + s, num_blocks - 1), 0)

    in_spec = pl.BlockSpec((tr, _LANES), in_index)
    out_spec = pl.BlockSpec((1, 8, _LANES), lambda c, s: (c, 0, 0))

    kernel = _make_mse_kernel(steps=steps, tr=tr, rows=rows,
                              padded_blocks=padded_blocks)

    partials = pl.pallas_call(
        kernel,
        out_shape=jax.ShapeDtypeStruct((num_chunks, 8, _LANES), jnp.float32),
        grid=(num_chunks, steps),
        in_specs=[in_spec, in_spec],
        out_specs=out_spec,
        compiler_params=pltpu.CompilerParams(
            dimension_semantics=("parallel", "arbitrary"),
            vmem_limit_bytes=32 * 1024 * 1024,
        ),
        cost_estimate=pl.CostEstimate(
            flops=3 * total,
            transcendentals=0,
            bytes_accessed=total * (isz_p + isz_t) + num_chunks * 8 * _LANES * 4,
        ),
    )(p2, t2)

    # Single cross-lane reduce outside the kernel; divide by the TRUE element count.
    return (partials.sum() / jnp.float32(total)).astype(jnp.float32)


if __name__ == "__main__":
    key = jax.random.PRNGKey(0)
    k1, k2 = jax.random.split(key)
    # NCHW inputs consistent with a conv-style prediction/target pair.
    y_pred = jax.random.normal(k1, (2, 4, 16, 16), dtype=jnp.float32)
    y_true = jax.random.normal(k2, (2, 4, 16, 16), dtype=jnp.float32)

    loss = jax.jit(custom_loss_mse)(y_pred, y_true)
    loss = jax.block_until_ready(loss)

    # Reference check against plain-JAX MSE.
    ref = jnp.mean((y_pred - y_true) ** 2)
    assert jnp.allclose(loss, ref, rtol=1e-5, atol=1e-6), (loss, ref)

    print("KERNEL_OK")
</pallas_src>

<mosaic_0001>
module attributes {stable_mosaic.version = 11 : i64} {
  func.func @kernel(%arg0: i32, %arg1: i32, %arg2: memref<32x128xf32, #tpu.memory_space<vmem>>, %arg3: memref<32x128xf32, #tpu.memory_space<vmem>>, %arg4: memref<1x8x128xf32, #tpu.memory_space<vmem>>) attributes {dimension_semantics = [#tpu.dimension_semantics<parallel>, #tpu.dimension_semantics<arbitrary>], iteration_bounds = array<i64: 1, 1>, scalar_prefetch = 0 : i64, scratch_operands = 0 : i64, tpu.core_type = #tpu.core_type<tc>, window_params = [{transform_indices = @transform_0, window_bounds = array<i64: 32, 128>}, {transform_indices = @transform_1, window_bounds = array<i64: 32, 128>}, {transform_indices = @transform_2, window_bounds = array<i64: 1, 8, 128>}]} {
    %c0_i32 = arith.constant 0 : i32
    %0 = arith.cmpi eq, %arg1, %c0_i32 : i32
    %1 = arith.extui %0 : i1 to i32
    %c0_i32_0 = arith.constant 0 : i32
    %2 = arith.cmpi ne, %1, %c0_i32_0 : i32
    scf.if %2 {
      %cst = arith.constant 0.000000e+00 : f32
      %8 = vector.broadcast %cst : f32 to vector<1x8x128xf32>
      %c0 = arith.constant 0 : index
      %c0_3 = arith.constant 0 : index
      %c0_4 = arith.constant 0 : index
      %9 = vector.load %arg4[%c0, %c0_3, %c0_4] : memref<1x8x128xf32, #tpu.memory_space<vmem>>, vector<1x8x128xf32>
      tpu.vector_store %arg4[%c0, %c0_3, %c0_4], %8 {strides = array<i32>} : memref<1x8x128xf32, #tpu.memory_space<vmem>>, vector<1x8x128xf32>,
    } else {
    }
    %c1_i32 = arith.constant 1 : i32
    %3 = arith.muli %arg0, %c1_i32 : i32
    %4 = arith.addi %3, %arg1 : i32
    %c0_i32_1 = arith.constant 0 : i32
    %5 = arith.cmpi sge, %4, %c0_i32_1 : i32
    %6 = arith.extui %5 : i1 to i32
    %c0_i32_2 = arith.constant 0 : i32
    %7 = arith.cmpi ne, %6, %c0_i32_2 : i32
    scf.if %7 {
      %8 = tpu.iota {dimensions = array<i32: 0>} : vector<32x128xi32>
      %cst = arith.constant 0.000000e+00 : f32
      %9 = vector.broadcast %cst : f32 to vector<4x8x128xf32>
      %c0_i32_3 = arith.constant 0 : i32
      %c32_i32 = arith.constant 32 : i32
      %10 = arith.muli %c0_i32_3, %c32_i32 : i32
      %11 = tpu.assume_multiple %10, 32 : i32
      %12 = arith.index_cast %11 : i32 to index
      %c0 = arith.constant 0 : index
      %13 = vector.load %arg2[%12, %c0] : memref<32x128xf32, #tpu.memory_space<vmem>>, vector<32x128xf32>
      %14 = arith.index_cast %11 : i32 to index
      %c0_4 = arith.constant 0 : index
      %15 = vector.load %arg3[%14, %c0_4] : memref<32x128xf32, #tpu.memory_space<vmem>>, vector<32x128xf32>
      %16 = arith.subf %13, %15 : vector<32x128xf32>
      %17 = arith.mulf %16, %16 : vector<32x128xf32>
      %c32_i32_5 = arith.constant 32 : i32
      %18 = arith.muli %4, %c32_i32_5 : i32
      %19 = arith.addi %18, %11 : i32
      %20 = vector.broadcast %19 : i32 to vector<32x128xi32>
      %21 = arith.addi %8, %20 : vector<32x128xi32>
      %c16_i32 = arith.constant 16 : i32
      %22 = vector.broadcast %c16_i32 : i32 to vector<32x128xi32>
      %23 = arith.cmpi slt, %21, %22 : vector<32x128xi32>
      %cst_6 = arith.constant 0.000000e+00 : f32
      %24 = vector.broadcast %cst_6 : f32 to vector<32x128xf32>
      %25 = arith.select %23, %17, %24 : vector<32x128xi1>, vector<32x128xf32>
      %26 = vector.shape_cast %25 : vector<32x128xf32> to vector<4x8x128xf32>
      %27 = arith.addf %9, %26 : vector<4x8x128xf32>
      %c1_i32_7 = arith.constant 1 : i32
      %c0_8 = arith.constant 0 : index
      %c0_9 = arith.constant 0 : index
      %c0_10 = arith.constant 0 : index
      %28 = vector.load %arg4[%c0_8, %c0_9, %c0_10] : memref<1x8x128xf32, #tpu.memory_space<vmem>>, vector<1x8x128xf32>
      %29 = vector.shape_cast %28 : vector<1x8x128xf32> to vector<8x128xf32>
      %30 = vector.extract_strided_slice %27 {offsets = [0, 0, 0], sizes = [1, 8, 128], strides = [1, 1, 1]} : vector<4x8x128xf32> to vector<1x8x128xf32>
      %31 = vector.shape_cast %30 : vector<1x8x128xf32> to vector<8x128xf32>
      %32 = vector.extract_strided_slice %27 {offsets = [1, 0, 0], sizes = [1, 8, 128], strides = [1, 1, 1]} : vector<4x8x128xf32> to vector<1x8x128xf32>
      %33 = vector.shape_cast %32 : vector<1x8x128xf32> to vector<8x128xf32>
      %34 = arith.addf %31, %33 : vector<8x128xf32>
      %35 = vector.extract_strided_slice %27 {offsets = [2, 0, 0], sizes = [1, 8, 128], strides = [1, 1, 1]} : vector<4x8x128xf32> to vector<1x8x128xf32>
      %36 = vector.shape_cast %35 : vector<1x8x128xf32> to vector<8x128xf32>
      %37 = vector.extract_strided_slice %27 {offsets = [3, 0, 0], sizes = [1, 8, 128], strides = [1, 1, 1]} : vector<4x8x128xf32> to vector<1x8x128xf32>
      %38 = vector.shape_cast %37 : vector<1x8x128xf32> to vector<8x128xf32>
      %39 = arith.addf %36, %38 : vector<8x128xf32>
      %40 = arith.addf %34, %39 : vector<8x128xf32>
      %41 = arith.addf %29, %40 : vector<8x128xf32>
      %c0_11 = arith.constant 0 : index
      %c0_12 = arith.constant 0 : index
      %c0_13 = arith.constant 0 : index
      %42 = vector.load %arg4[%c0_11, %c0_12, %c0_13] : memref<1x8x128xf32, #tpu.memory_space<vmem>>, vector<1x8x128xf32>
      %43 = vector.shape_cast %42 : vector<1x8x128xf32> to vector<8x128xf32>
      %44 = vector.shape_cast %41 : vector<8x128xf32> to vector<1x8x128xf32>
      tpu.vector_store %arg4[%c0_11, %c0_12, %c0_13], %44 {strides = array<i32>} : memref<1x8x128xf32, #tpu.memory_space<vmem>>, vector<1x8x128xf32>,
    } else {
    }
    return
  }
  func.func @transform_0(%arg0: i32, %arg1: i32) -> (i32, i32) {
    %c1_i32 = arith.constant 1 : i32
    %0 = arith.muli %arg0, %c1_i32 : i32
    %1 = arith.addi %0, %arg1 : i32
    %c0_i32 = arith.constant 0 : i32
    %2 = arith.minsi %1, %c0_i32 : i32
    %c0_i32_0 = arith.constant 0 : i32
    %c0_i32_1 = arith.constant 0 : i32
    return %2, %c0_i32_0 : i32, i32
  }
  func.func @transform_1(%arg0: i32, %arg1: i32) -> (i32, i32) {
    %c1_i32 = arith.constant 1 : i32
    %0 = arith.muli %arg0, %c1_i32 : i32
    %1 = arith.addi %0, %arg1 : i32
    %c0_i32 = arith.constant 0 : i32
    %2 = arith.minsi %1, %c0_i32 : i32
    %c0_i32_0 = arith.constant 0 : i32
    %c0_i32_1 = arith.constant 0 : i32
    return %2, %c0_i32_0 : i32, i32
  }
  func.func @transform_2(%arg0: i32, %arg1: i32) -> (i32, i32, i32) {
    %c0_i32 = arith.constant 0 : i32
    %c0_i32_0 = arith.constant 0 : i32
    %c0_i32_1 = arith.constant 0 : i32
    return %arg0, %c0_i32, %c0_i32_0 : i32, i32, i32
  }
}

</mosaic_0001>

<llo_original>
// kernel: custom_loss_mse.1
$region0: #{custom_loss_mse.1}
  #allocation0 [shape = 'u32[]', space=smem, size = 0x4, offset = 0x4, fixed_abs, tag = 'smem constant byte address 0x4 - core index']
  #allocation1 [shape = 'u32[72,128]{1,0:T(1,128)}', space=vmem, size = 0x9000, scoped, tag = 'internal scratch']
  %s0 = inlined_call_operand.vmem [shape: f32[16,128], index: 0, kind: input, shape index: {}]
  %s1 = inlined_call_operand.vmem [shape: f32[16,128], index: 1, kind: input, shape index: {}]
  %s2 = inlined_call_operand.vmem [shape: f32[1,8,128], index: 2, kind: output, shape index: {}]
  %s3 = sld [smem:[#allocation0]]
  $region26: #{custom_loss_mse.1} parent=0
    _
  %s5 = ssub.s32 1, %s3
  %s6 = scalar_select 0, %s5, %s3
  // Predicated region
  $region2: #{custom_loss_mse.1} parent=0 // pred_check
    _
  $region3: #{custom_loss_mse.1} parent=0 // pred_check_branch
    %8 = sbr.rel (0) target = $region5
  $region4: #{custom_loss_mse.1} parent=0 // pred_region
    %s9 = sadd.s32 0, 0
    %p10 = scmp.lt.s32.totalorder %s9, 0
    %s11 = scalar_select %p10, %s9, 0
    %s12 = smul.u32 4, %s11
    %s13 = ssub.s32 2, %s12
    %s14 = smul.u32 8, %s13
    %p15 = scmp.lt.s32.totalorder %s12, 1
    %s16 = scalar_select %p15, %s12, 1
    %s17 = smul.addr %s16, 8
    %s18 = scalar_lea.vmem %s0, %s17
    %s19 = sadd.s32 0, 0
    %p20 = scmp.lt.s32.totalorder %s19, 0
    %s21 = scalar_select %p20, %s19, 0
    %s22 = smul.u32 4, %s21
    %s23 = ssub.s32 2, %s22
    %s24 = smul.u32 8, %s23
  $region5: #{custom_loss_mse.1} parent=0 // pred_fallthru
    _
  // Predicated region
  $region6: #{custom_loss_mse.1} parent=0 // pred_check
    _
  $region7: #{custom_loss_mse.1} parent=0 // pred_check_branch
    %26 = sbr.rel (0) target = $region9
  $region8: #{custom_loss_mse.1} parent=0 // pred_region
    %s27 = sadd.s32 0, 0
    %p28 = scmp.lt.s32.totalorder %s27, 0
    %s29 = scalar_select %p28, %s27, 0
    %s30 = smul.u32 4, %s29
    %s31 = ssub.s32 2, %s30
    %s32 = smul.u32 8, %s31
    %p33 = scmp.lt.s32.totalorder %s30, 1
    %s34 = scalar_select %p33, %s30, 1
    %s35 = smul.addr %s34, 8
    %s36 = scalar_lea.vmem %s1, %s35
    %s37 = sadd.s32 0, 0
    %p38 = scmp.lt.s32.totalorder %s37, 0
    %s39 = scalar_select %p38, %s37, 0
    %s40 = smul.u32 4, %s39
    %s41 = ssub.s32 2, %s40
    %s42 = smul.u32 8, %s41
  $region9: #{custom_loss_mse.1} parent=0 // pred_fallthru
    _
  %s43 = sadd.s32 0, 0
  %p44 = scmp.lt.s32.totalorder %s43, 0
  %s45 = scalar_select %p44, %s43, 0
  %s46 = smul.u32 4, %s45
  %s47 = ssub.s32 2, %s46
  %s48 = smul.u32 8, %s47
  %p49 = scmp.lt.s32.totalorder %s46, 1
  %s50 = scalar_select %p49, %s46, 1
  %s51 = smul.addr %s50, 8
  %s52 = scalar_lea.vmem %s0, %s51
  %s53 = sadd.s32 0, 0
  %p54 = scmp.lt.s32.totalorder %s53, 0
  %s55 = scalar_select %p54, %s53, 0
  %s56 = smul.u32 4, %s55
  %s57 = ssub.s32 2, %s56
  %s58 = smul.u32 8, %s57
  %p59 = scmp.lt.s32.totalorder %s56, 1
  %s60 = scalar_select %p59, %s56, 1
  %s61 = smul.addr %s60, 8
  %s62 = scalar_lea.vmem %s1, %s61
  %s63 = sadd.s32 0, 0
  %p64 = scmp.lt.s32.totalorder %s63, 0
  %s65 = scalar_select %p64, %s63, 0
  %s66 = smul.u32 4, %s65
  %s67 = ssub.s32 2, %s66
  %s68 = smul.u32 8, %s67
  %p69 = scmp.lt.s32.totalorder %s66, 1
  %s70 = scalar_select %p69, %s66, 1
  %s71 = smul.addr %s70, 8
  %s72 = scalar_lea.vmem %s0, %s71
  %s73 = sadd.s32 0, 0
  %p74 = scmp.lt.s32.totalorder %s73, 0
  %s75 = scalar_select %p74, %s73, 0
  %s76 = smul.u32 4, %s75
  %s77 = ssub.s32 2, %s76
  %s78 = smul.u32 8, %s77
  %s79 = sadd.s32 0, 0
  %p80 = scmp.lt.s32.totalorder %s79, 0
  %s81 = scalar_select %p80, %s79, 0
  %s82 = smul.u32 4, %s81
  %s83 = ssub.s32 2, %s82
  %s84 = smul.u32 8, %s83
  %p85 = scmp.lt.s32.totalorder %s82, 1
  %s86 = scalar_select %p85, %s82, 1
  %s87 = smul.addr %s86, 8
  %s88 = scalar_lea.vmem %s1, %s87
  %s89 = sadd.s32 0, 0
  %p90 = scmp.lt.s32.totalorder %s89, 0
  %s91 = scalar_select %p90, %s89, 0
  %s92 = smul.u32 4, %s91
  %s93 = ssub.s32 2, %s92
  %s94 = smul.u32 8, %s93
  %p95 = scmp.eq.s32.totalorder 0, 0
  // Predicated region
  $region10: #{custom_loss_mse.1} parent=0 // pred_check
    %p96 = pneg %p95
  $region11: #{custom_loss_mse.1} parent=0 // pred_check_branch
    %98 = sbr.rel (%p96) target = $region13
  $region12: #{custom_loss_mse.1} parent=0 // pred_region
    %99 = vst [vmem:[%s2] sm:$0xff] 0.0
  $region13: #{custom_loss_mse.1} parent=0 // pred_fallthru
    _
  %s100 = sadd.s32 0, 0
  %p101 = scmp.ge.s32.totalorder %s100, 0
  // Predicated region
  $region14: #{custom_loss_mse.1} parent=0 // pred_check
    %p102 = pneg %p101
  $region15: #{custom_loss_mse.1} parent=0 // pred_check_branch
    %104 = sbr.rel (%p102) target = $region17
  $region16: #{custom_loss_mse.1} parent=0 // pred_region
    %v105 = vlaneseq
    %v106 = vshrl.u32 %v105, 7
    %v107 = vadd.s32 %v106, 8
    %v108 = vadd.s32 %v106, 16
    %v109 = vadd.s32 %v106, 24
    %v110 = vld [vmem:[%s72] sm:$0xff]
    %v111 = vld [vmem:[%s72 + $0x8] sm:$0xff]
    %v112 = vld [vmem:[%s72 + $0x10] sm:$0xff]
    %v113 = vld [vmem:[%s72 + $0x18] sm:$0xff]
    %v114 = vld [vmem:[%s88] sm:$0xff]
    %v115 = vld [vmem:[%s88 + $0x8] sm:$0xff]
    %v116 = vld [vmem:[%s88 + $0x10] sm:$0xff]
    %v117 = vld [vmem:[%s88 + $0x18] sm:$0xff]
    %v118 = vsub.f32 %v110, %v114
    %v119 = vsub.f32 %v111, %v115
    %v120 = vsub.f32 %v112, %v116
    %v121 = vsub.f32 %v113, %v117
    %v122 = vmul.f32 %v118, %v118
    %v123 = vmul.f32 %v119, %v119
    %v124 = vmul.f32 %v120, %v120
    %v125 = vmul.f32 %v121, %v121
    %s126 = smul.u32 %s100, 32
    %s127 = sadd.s32 %s126, 0
    %v128 = vstv %s127
    %v129 = vadd.s32 %v106, %v128
    %v130 = vadd.s32 %v107, %v128
    %v131 = vadd.s32 %v108, %v128
    %v132 = vadd.s32 %v109, %v128
    %vm133 = vcmp.lt.s32.totalorder %v129, 16
    %vm134 = vcmp.lt.s32.totalorder %v130, 16
    %vm135 = vcmp.lt.s32.totalorder %v131, 16
    %vm136 = vcmp.lt.s32.totalorder %v132, 16
    %v137 = vsel %vm133, %v122, 0.0
    %v138 = vsel %vm134, %v123, 0.0
    %v139 = vsel %vm135, %v124, 0.0
    %v140 = vsel %vm136, %v125, 0.0
    %v141 = vadd.f32 %v137, 0.0
    %v142 = vadd.f32 %v138, 0.0
    %v143 = vadd.f32 %v139, 0.0
    %v144 = vadd.f32 %v140, 0.0
    %v145 = vld [vmem:[%s2] sm:$0xff]
    %v146 = vadd.f32 %v141, %v142
    %v147 = vadd.f32 %v143, %v144
    %v148 = vadd.f32 %v146, %v147
    %v149 = vadd.f32 %v145, %v148
    %150 = vst [vmem:[%s2] sm:$0xff] %v149
  $region17: #{custom_loss_mse.1} parent=0 // pred_fallthru
    _
  // Predicated region
  $region18: #{custom_loss_mse.1} parent=0 // pred_check
    _
  $region19: #{custom_loss_mse.1} parent=0 // pred_check_branch
    %152 = sbr.rel (0) target = $region21
  $region20: #{custom_loss_mse.1} parent=0 // pred_region
    _
  $region21: #{custom_loss_mse.1} parent=0 // pred_fallthru
    _
  // Predicated region
  $region22: #{custom_loss_mse.1} parent=0 // pred_check
    _
  $region23: #{custom_loss_mse.1} parent=0 // pred_check_branch
    %154 = sbr.rel (0) target = $region25
  $region24: #{custom_loss_mse.1} parent=0 // pred_region
    _
  $region25: #{custom_loss_mse.1} parent=0 // pred_fallthru
    _

</llo_original>
